<compile_context>
chip_gen: v6e
topology: v6e:2x2x1
jax: 0.10.0
libtpu: 0.0.40
codegen_flags: <defaults>
</compile_context>

<pallas_src>
import jax
import jax.numpy as jnp
from jax import lax
from jax.experimental import pallas as pl
from jax.experimental.pallas import tpu as pltpu


def _round_up(v, m):
    return (v + m - 1) // m * m


# ---------------------------------------------------------------------------
# Weight preparation: call ONCE at model init, not per forward.
# ---------------------------------------------------------------------------
def prepare_projector_weight(w, lane_multiple=256):
    """nn.Linear weight [n_cls, D] -> ([D, N_pad] bf16, n_cls).

    Transposed, cast to bf16 (halves weight DMA bytes) and padded to a
    lane-dense multiple of 256 (keeps the 256-wide v6e/v7x MXU full; the
    extra zero columns are harmless on v5e and are sliced off after the call).
    """
    n_cls, d = w.shape
    n_pad = _round_up(n_cls, lane_multiple)
    w_t = jnp.transpose(w).astype(jnp.bfloat16)
    if n_pad != n_cls:
        w_t = jnp.pad(w_t, ((0, 0), (0, n_pad - n_cls)))
    return w_t, n_cls


# ---------------------------------------------------------------------------
# Kernels
# ---------------------------------------------------------------------------
def _resident_kernel(x_ref, w_ref, s_ref, o_ref):
    # x_ref: [tm, D] VMEM (f32), w_ref: [D, N_pad] VMEM (bf16, resident),
    # s_ref: [1] SMEM = exp(logit_scale), o_ref: [tm, N_pad] f32.
    x = x_ref[...].astype(jnp.float32)
    # F.normalize(x, dim=1) fused with the logit scale:
    #   scale / max(||x||, 1e-12) == scale * rsqrt(max(||x||^2, 1e-24))
    sq = jnp.sum(x * x, axis=1, keepdims=True)
    inv = s_ref[0] * lax.rsqrt(jnp.maximum(sq, 1e-24))
    x_n = (x * inv).astype(jnp.bfloat16)
    o_ref[...] = jnp.dot(x_n, w_ref[...],
                         preferred_element_type=jnp.float32).astype(o_ref.dtype)


def _stream_kernel(x_ref, w_ref, s_ref, o_ref, xn_ref):
    # Streaming-W variant: normalization computed once per row tile (j == 0)
    # and cached in the VMEM scratch xn_ref (bf16); reused for every class tile.
    @pl.when(pl.program_id(1) == 0)
    def _():
        x = x_ref[...].astype(jnp.float32)
        sq = jnp.sum(x * x, axis=1, keepdims=True)
        inv = s_ref[0] * lax.rsqrt(jnp.maximum(sq, 1e-24))
        xn_ref[...] = (x * inv).astype(jnp.bfloat16)

    o_ref[...] = jnp.dot(xn_ref[...], w_ref[...],
                         preferred_element_type=jnp.float32).astype(o_ref.dtype)


# ---------------------------------------------------------------------------
# Forward wrapper
# ---------------------------------------------------------------------------
def projector_forward(x, w_prepped, logit_scale, n_cls,
                      out_dtype=jnp.float32,
                      w_resident_bytes=12 << 20,
                      vmem_budget=32 << 20):
    """x: [B, D] features; w_prepped: [D, N_pad] bf16 from
    prepare_projector_weight; logit_scale: scalar (pre-exp, as in the module).
    Returns [B, n_cls] logits in out_dtype (f32 by default, matching PyTorch).
    """
    B, D = x.shape
    D2, N_pad = w_prepped.shape
    assert D == D2 and N_pad % 128 == 0 and n_cls <= N_pad

    # One scalar exp in the wrapper, not one per grid step in the kernel.
    scale = jnp.exp(jnp.asarray(logit_scale, jnp.float32)).reshape((1,))

    x_bytes = x.dtype.itemsize
    w_bytes = D * N_pad * 2                      # bf16, single resident copy

    def pick_tm(per_row_bytes, fixed_bytes):
        tm_cap = max(_round_up(B, 16), 16)       # bf16 sublane packing: mult of 16
        tm_sel = 16
        for tm in (512, 256, 128, 64, 32, 16):
            if tm > tm_cap and tm != 16:
                continue
            if fixed_bytes + tm * per_row_bytes <= vmem_budget:
                tm_sel = tm
                break
        # v7x has 2 TensorCores: give the "parallel" row axis >= 2 blocks
        # whenever the batch is big enough to split.
        if B > 16 and _round_up(B, tm_sel) // tm_sel < 2:
            tm_half = _round_up(-(-B // 2), 16)
            if tm_half < tm_sel:
                tm_sel = tm_half
        return tm_sel

    if w_bytes <= w_resident_bytes:
        # ---- W-resident path: 1-D grid over row tiles, W fetched once. ----
        per_row = 2 * D * x_bytes + 2 * N_pad * 4       # x + out, double-buffered
        tm = pick_tm(per_row, w_bytes)
        B_pad = _round_up(B, tm)
        x_p = x if B_pad == B else jnp.pad(x, ((0, B_pad - B), (0, 0)))

        working_set = w_bytes + tm * per_row
        # Tight limit: working set + W once more (in case the backend still
        # double-buffers the constant block) + 4 MiB compiler headroom.
        vmem_limit = int(min(max(working_set + w_bytes + (4 << 20), 16 << 20),
                             48 << 20))

        out = pl.pallas_call(
            _resident_kernel,
            out_shape=jax.ShapeDtypeStruct((B_pad, N_pad), out_dtype),
            grid=(B_pad // tm,),
            in_specs=[
                pl.BlockSpec((tm, D), lambda i: (i, 0)),
                pl.BlockSpec((D, N_pad), lambda i: (0, 0),
                             pipeline_mode=pl.Buffered(1)),   # constant block
                pl.BlockSpec(memory_space=pltpu.SMEM),        # exp(logit_scale)
            ],
            out_specs=pl.BlockSpec((tm, N_pad), lambda i: (i, 0)),
            compiler_params=pltpu.CompilerParams(
                dimension_semantics=("parallel",),
                vmem_limit_bytes=vmem_limit,
            ),
        )(x_p, w_prepped, scale)
        return out[:B, :n_cls]

    # ---- Streaming path: W too big to keep resident; 2-D grid (i, j). -----
    # pick_tm maximizes the row tile, which minimizes full passes over W.
    # TODO(synk): for very large D (>= ~8K) add a K-reduction grid axis with
    # an f32 accumulator instead of loading full [tm, D] / [D, tn] slabs.
    tn = next(c for c in (1024, 512, 256, 128) if N_pad % c == 0)
    per_row = 2 * D * x_bytes + 2 * tn * 4 + D * 2       # x, out (x2), xn scratch
    fixed = 2 * D * tn * 2                               # W tile, double-buffered
    tm = pick_tm(per_row, fixed)
    B_pad = _round_up(B, tm)
    x_p = x if B_pad == B else jnp.pad(x, ((0, B_pad - B), (0, 0)))

    working_set = fixed + tm * per_row
    vmem_limit = int(min(max(working_set + (4 << 20), 16 << 20), 48 << 20))

    out = pl.pallas_call(
        _stream_kernel,
        out_shape=jax.ShapeDtypeStruct((B_pad, N_pad), out_dtype),
        grid=(B_pad // tm, N_pad // tn),
        in_specs=[
            pl.BlockSpec((tm, D), lambda i, j: (i, 0)),   # constant across j
            pl.BlockSpec((D, tn), lambda i, j: (0, j)),
            pl.BlockSpec(memory_space=pltpu.SMEM),
        ],
        out_specs=pl.BlockSpec((tm, tn), lambda i, j: (i, j)),
        scratch_shapes=[pltpu.VMEM((tm, D), jnp.bfloat16)],
        compiler_params=pltpu.CompilerParams(
            dimension_semantics=("parallel", "arbitrary"),
            vmem_limit_bytes=vmem_limit,
        ),
    )(x_p, w_prepped, scale)
    return out[:B, :n_cls]


if __name__ == "__main__":
    # Small synthetic config consistent with the module:
    #   vis_dim = 64  -> fc in_features D = vis_dim * 2 = 128
    #   n_cls   = 16, batch = 8
    B, vis_dim, n_cls = 8, 64, 16
    D = vis_dim * 2

    key = jax.random.PRNGKey(0)
    kx, kw = jax.random.split(key)
    x = jax.random.normal(kx, (B, D), dtype=jnp.float32)
    w = jax.random.normal(kw, (n_cls, D), dtype=jnp.float32) * 0.02  # nn.Linear weight [n_cls, D]
    logit_scale = jnp.log(jnp.float32(1.0 / 0.07))                   # CLIP-style init

    # Done once at model init (hoisted out of the per-forward path).
    w_prepped, n_out = prepare_projector_weight(w)

    # Pure-JAX f32 reference.
    x_norm = x / jnp.maximum(jnp.sqrt(jnp.sum(x * x, axis=1, keepdims=True)), 1e-12)
    ref = (x_norm @ w.T) * jnp.exp(logit_scale)

    # Resident-W fast path (the common case for classifier heads).
    out = projector_forward(x, w_prepped, logit_scale, n_out)
    jax.block_until_ready(out)
    assert out.shape == ref.shape and out.dtype == jnp.float32
    assert jnp.allclose(out, ref, atol=2e-2, rtol=2e-2), (
        float(jnp.max(jnp.abs(out - ref))))

    # Streaming-W fallback path (forced, to exercise the 2-D-grid kernel).
    out_s = projector_forward(x, w_prepped, logit_scale, n_out, w_resident_bytes=0)
    jax.block_until_ready(out_s)
    assert jnp.allclose(out_s, ref, atol=2e-2, rtol=2e-2), (
        float(jnp.max(jnp.abs(out_s - ref))))

    print("KERNEL_OK")
</pallas_src>

<mosaic_0001>
module attributes {stable_mosaic.version = 11 : i64} {
  func.func @_resident_kernel(%arg0: i32, %arg1: memref<16x128xf32, #tpu.memory_space<vmem>>, %arg2: memref<128x256xbf16, #tpu.memory_space<vmem>>, %arg3: memref<1xf32, #tpu.memory_space<smem>>, %arg4: memref<16x256xf32, #tpu.memory_space<vmem>>) attributes {dimension_semantics = [#tpu.dimension_semantics<parallel>], iteration_bounds = array<i64: 1>, scalar_prefetch = 0 : i64, scratch_operands = 0 : i64, tpu.core_type = #tpu.core_type<tc>, window_params = [{transform_indices = @transform_0, window_bounds = array<i64: 16, 128>}, {pipeline_mode = #tpu.pipeline_mode<synchronous>, transform_indices = @transform_1, window_bounds = array<i64: 128, 256>}, {transform_indices = @transform_2, window_bounds = array<i64: 1>}, {transform_indices = @transform_3, window_bounds = array<i64: 16, 256>}]} {
    %c0 = arith.constant 0 : index
    %c0_0 = arith.constant 0 : index
    %0 = vector.load %arg1[%c0, %c0_0] : memref<16x128xf32, #tpu.memory_space<vmem>>, vector<16x128xf32>
    %1 = arith.mulf %0, %0 : vector<16x128xf32>
    %cst = arith.constant dense<0.000000e+00> : vector<16xf32>
    %2 = vector.multi_reduction <add>, %1, %cst [1] : vector<16x128xf32> to vector<16xf32>
    %3 = vector.shape_cast %2 : vector<16xf32> to vector<16x1xf32>
    %c0_1 = arith.constant 0 : index
    %4 = memref.load %arg3[%c0_1] : memref<1xf32, #tpu.memory_space<smem>>
    %cst_2 = arith.constant 1.000000e-24 : f32
    %5 = vector.broadcast %cst_2 : f32 to vector<16x1xf32>
    %6 = arith.maximumf %3, %5 : vector<16x1xf32>
    %7 = math.rsqrt %6 : vector<16x1xf32>
    %8 = vector.broadcast %4 : f32 to vector<16x1xf32>
    %9 = arith.mulf %8, %7 : vector<16x1xf32>
    %10 = vector.broadcast %9 : vector<16x1xf32> to vector<16x128xf32>
    %11 = arith.mulf %0, %10 : vector<16x128xf32>
    %12 = arith.truncf %11 : vector<16x128xf32> to vector<16x128xbf16>
    %c0_3 = arith.constant 0 : index
    %c0_4 = arith.constant 0 : index
    %13 = vector.load %arg2[%c0_3, %c0_4] : memref<128x256xbf16, #tpu.memory_space<vmem>>, vector<128x256xbf16>
    %cst_5 = arith.constant dense<0.000000e+00> : vector<16x256xf32>
    %14 = tpu.matmul %12, %13, %cst_5 {dimension_numbers = #tpu.dot_dimension_numbers<[1], [0], [0], [1], [0, 0, 1, 1], [], []>} : vector<16x128xbf16>, vector<128x256xbf16>, vector<16x256xf32> -> vector<16x256xf32>
    %c0_6 = arith.constant 0 : index
    %c0_7 = arith.constant 0 : index
    %15 = vector.load %arg4[%c0_6, %c0_7] : memref<16x256xf32, #tpu.memory_space<vmem>>, vector<16x256xf32>
    tpu.vector_store %arg4[%c0_6, %c0_7], %14 {strides = array<i32>} : memref<16x256xf32, #tpu.memory_space<vmem>>, vector<16x256xf32>,
    return
  }
  func.func @transform_0(%arg0: i32) -> (i32, i32) {
    %c0_i32 = arith.constant 0 : i32
    %c0_i32_0 = arith.constant 0 : i32
    return %arg0, %c0_i32 : i32, i32
  }
  func.func @transform_1(%arg0: i32) -> (i32, i32) {
    %c0_i32 = arith.constant 0 : i32
    %c0_i32_0 = arith.constant 0 : i32
    %c0_i32_1 = arith.constant 0 : i32
    return %c0_i32, %c0_i32_0 : i32, i32
  }
  func.func @transform_2(%arg0: i32) -> i32 {
    %c0_i32 = arith.constant 0 : i32
    %c0_i32_0 = arith.constant 0 : i32
    return %c0_i32 : i32
  }
  func.func @transform_3(%arg0: i32) -> (i32, i32) {
    %c0_i32 = arith.constant 0 : i32
    %c0_i32_0 = arith.constant 0 : i32
    return %arg0, %c0_i32 : i32, i32
  }
}

</mosaic_0001>

<llo_original>
// kernel: tpu_custom_call.1
$region0: #{tpu_custom_call.1}
  #allocation0 [shape = 'u32[]', space=smem, size = 0x4, offset = 0x4, fixed_abs, tag = 'smem constant byte address 0x4 - core index']
  #allocation1 [shape = 'u32[144,128]{1,0:T(1,128)}', space=vmem, size = 0x12000, scoped, tag = 'internal scratch']
  #allocation2 [shape = 'f32[1]{0:T(128)S(6)}', space=smem, size = 0x200, scoped, tag = 'scoped memory for tpu_custom_call.1']
  %s0 = inlined_call_operand.hbm [shape: f32[16,128], index: 0, kind: input, shape index: {}]
  %s1 = inlined_call_operand.hbm [shape: bf16[128,256], index: 1, kind: input, shape index: {}]
  %s2 = inlined_call_operand.<no memory space> [shape: f32[1], index: 2, kind: input, shape index: {}]
  %s3 = inlined_call_operand.hbm [shape: f32[16,256], index: 3, kind: output, shape index: {}]
  %s4 = sld [smem:[#allocation0]]
  $region30: #{tpu_custom_call.1} parent=0
    _
  %s6 = ssub.s32 1, %s4
  %s7 = scalar_select 0, %s6, %s4
  %8 = sst [smem:[#allocation2]] %s2
  $region1: #{tpu_custom_call.1} parent=0
    #allocation3 [shape = 'u8[8192]{0}', space=vmem, size = 0x2000, scoped, tag = 'input window, operand 0, single buffered']
    #allocation4 [shape = 's32[1]{0}', space=sflag, size = 0x4, scoped, tag = 'scoped memory for tpu_custom_call.1']
    #allocation5 [shape = 's32[1]{0}', space=sflag, size = 0x4, scoped, tag = 'scoped memory for tpu_custom_call.1']
    #allocation6 [shape = 'u8[65536]{0}', space=vmem, size = 0x10000, scoped, tag = 'input window, operand 1, single buffered']
    #allocation7 [shape = 's32[1]{0}', space=sflag, size = 0x4, scoped, tag = 'scoped memory for tpu_custom_call.1']
    #allocation8 [shape = 'u8[16384]{0}', space=vmem, size = 0x4000, scoped, tag = 'output window, operand 0, single buffered']
    %9 = vsyncpa [#allocation4], 0
    %10 = vsyncpa [#allocation7], 0
    %11 = vsyncpa [#allocation5], 0
    // Predicated region
    $region2: #{tpu_custom_call.1} parent=1 // pred_check
      _
    $region3: #{tpu_custom_call.1} parent=1 // pred_check_branch
      %13 = sbr.rel (0) target = $region5
    $region4: #{tpu_custom_call.1} parent=1 // pred_region
      %s15 = ssub.s32 256, 256
      %16 = vsyncadd [#allocation4], %s15
      %s17 = sshll.u32 [#allocation3], 4
      %s18 = int_to_ptr.vmem [resolvable:$true] %s17
      %23 = dma.hbm_to_vmem [thread:$0]  %s0, 256, %s18, [#allocation4], 128, 128, 8
    $region5: #{tpu_custom_call.1} parent=1 // pred_fallthru
      _
    // Predicated region
    $region6: #{tpu_custom_call.1} parent=1 // pred_check
      _
    $region7: #{tpu_custom_call.1} parent=1 // pred_check_branch
      %25 = sbr.rel (0) target = $region9
    $region8: #{tpu_custom_call.1} parent=1 // pred_region
      %s27 = ssub.s32 2048, 2048
      %28 = vsyncadd [#allocation7], %s27
      %s29 = sshll.u32 [#allocation6], 4
      %s30 = int_to_ptr.vmem [resolvable:$true] %s29
      %35 = dma.hbm_to_vmem [thread:$0]  %s1, 2048, %s30, [#allocation7], 128, 128, 8
    $region9: #{tpu_custom_call.1} parent=1 // pred_fallthru
      _
    // Predicated region
    $region10: #{tpu_custom_call.1} parent=1 // pred_check
      _
    $region11: #{tpu_custom_call.1} parent=1 // pred_check_branch
      %37 = sbr.rel (0) target = $region13
    $region12: #{tpu_custom_call.1} parent=1 // pred_region
      _
    $region13: #{tpu_custom_call.1} parent=1 // pred_fallthru
      _
    // Predicated region
    $region14: #{tpu_custom_call.1} parent=1 // pred_check
      _
    $region15: #{tpu_custom_call.1} parent=1 // pred_check_branch
      %39 = sbr.rel (0) target = $region17
    $region16: #{tpu_custom_call.1} parent=1 // pred_region
      %40 = dma.done [#allocation4], 256
    $region17: #{tpu_custom_call.1} parent=1 // pred_fallthru
      _
    // Predicated region
    $region18: #{tpu_custom_call.1} parent=1 // pred_check
      _
    $region19: #{tpu_custom_call.1} parent=1 // pred_check_branch
      %42 = sbr.rel (0) target = $region21
    $region20: #{tpu_custom_call.1} parent=1 // pred_region
      %43 = dma.done [#allocation7], 2048
    $region21: #{tpu_custom_call.1} parent=1 // pred_fallthru
      _
    %v45 = vld [vmem:[#allocation3] sm:$0xff]
    %v46 = vld [vmem:[#allocation3 + $0x8] sm:$0xff]
    %v47 = vmul.f32 %v45, %v45
    %v48 = vmul.f32 %v46, %v46
    %49 = vadd.xlane.f32.xlu0 %v47
    %v50 = vpop.xlane.xlu0 %49
    %51 = vadd.xlane.f32.xlu0 %v48
    %v52 = vpop.xlane.xlu0 %51
    %s53 = sld [smem:[#allocation2]]
    %v54 = vmax.f32 %v50, 1e-24
    %v55 = vmax.f32 %v52, 1e-24
    %v56 = vrsqrt.pop %v54
    %v57 = vrsqrt.pop %v55
    %v58 = vstv %s53
    %v59 = vmul.f32 %v58, %v56
    %v60 = vmul.f32 %v58, %v57
    %v61 = vmul.f32 %v45, %v59
    %v62 = vmul.f32 %v46, %v60
    %v63 = vpack.c.bf16 %v62, %v61
    %v64 = vld [vmem:[#allocation6] sm:$0xff]
    %v65 = vld [vmem:[#allocation6 + $0x8] sm:$0xff]
    %v66 = vld [vmem:[#allocation6 + $0x10] sm:$0xff]
    %v67 = vld [vmem:[#allocation6 + $0x18] sm:$0xff]
    %v68 = vld [vmem:[#allocation6 + $0x20] sm:$0xff]
    %v69 = vld [vmem:[#allocation6 + $0x28] sm:$0xff]
    %v70 = vld [vmem:[#allocation6 + $0x30] sm:$0xff]
    %v71 = vld [vmem:[#allocation6 + $0x38] sm:$0xff]
    %v72 = vld [vmem:[#allocation6 + $0x40] sm:$0xff]
    %v73 = vld [vmem:[#allocation6 + $0x48] sm:$0xff]
    %v74 = vld [vmem:[#allocation6 + $0x50] sm:$0xff]
    %v75 = vld [vmem:[#allocation6 + $0x58] sm:$0xff]
    %v76 = vld [vmem:[#allocation6 + $0x60] sm:$0xff]
    %v77 = vld [vmem:[#allocation6 + $0x68] sm:$0xff]
    %v78 = vld [vmem:[#allocation6 + $0x70] sm:$0xff]
    %v79 = vld [vmem:[#allocation6 + $0x78] sm:$0xff]
    %v96 = vunpack.c.l.b16 %v64
    %v97 = vunpack.c.h.b16 %v64
    %v98 = vunpack.c.l.b16 %v65
    %v99 = vunpack.c.h.b16 %v65
    %v100 = vunpack.c.l.b16 %v66
    %v101 = vunpack.c.h.b16 %v66
    %v102 = vunpack.c.l.b16 %v67
    %v103 = vunpack.c.h.b16 %v67
    %v104 = vunpack.c.l.b16 %v68
    %v105 = vunpack.c.h.b16 %v68
    %v106 = vunpack.c.l.b16 %v69
    %v107 = vunpack.c.h.b16 %v69
    %v108 = vunpack.c.l.b16 %v70
    %v109 = vunpack.c.h.b16 %v70
    %v110 = vunpack.c.l.b16 %v71
    %v111 = vunpack.c.h.b16 %v71
    %v112 = vunpack.c.l.b16 %v72
    %v113 = vunpack.c.h.b16 %v72
    %v114 = vunpack.c.l.b16 %v73
    %v115 = vunpack.c.h.b16 %v73
    %v116 = vunpack.c.l.b16 %v74
    %v117 = vunpack.c.h.b16 %v74
    %v118 = vunpack.c.l.b16 %v75
    %v119 = vunpack.c.h.b16 %v75
    %v120 = vunpack.c.l.b16 %v76
    %v121 = vunpack.c.h.b16 %v76
    %v122 = vunpack.c.l.b16 %v77
    %v123 = vunpack.c.h.b16 %v77
    %v124 = vunpack.c.l.b16 %v78
    %v125 = vunpack.c.h.b16 %v78
    %v126 = vunpack.c.l.b16 %v79
    %v127 = vunpack.c.h.b16 %v79
    %v128 = vpack.c.b16 %v98, %v96
    %v129 = vpack.c.b16 %v99, %v97
    %v130 = vpack.c.b16 %v102, %v100
    %v131 = vpack.c.b16 %v103, %v101
    %v132 = vpack.c.b16 %v106, %v104
    %v133 = vpack.c.b16 %v107, %v105
    %v134 = vpack.c.b16 %v110, %v108
    %v135 = vpack.c.b16 %v111, %v109
    %v136 = vpack.c.b16 %v114, %v112
    %v137 = vpack.c.b16 %v115, %v113
    %v138 = vpack.c.b16 %v118, %v116
    %v139 = vpack.c.b16 %v119, %v117
    %v140 = vpack.c.b16 %v122, %v120
    %v141 = vpack.c.b16 %v123, %v121
    %v142 = vpack.c.b16 %v126, %v124
    %v143 = vpack.c.b16 %v127, %v125
    %160 = vmatprep.subr.bf16.mxu0 %v143
    %161 = vmatpush1.bf16.msra.mxu0 %v142
    %162 = vmatprep.subr.bf16.mxu0 %v141
    %163 = vmatpush1.bf16.msra.mxu0 %v140
    %164 = vmatprep.subr.bf16.mxu0 %v139
    %165 = vmatpush1.bf16.msra.mxu0 %v138
    %166 = vmatprep.subr.bf16.mxu0 %v137
    %167 = vmatpush1.bf16.msra.mxu0 %v136
    %168 = vmatprep.subr.bf16.mxu0 %v135
    %169 = vmatpush1.bf16.msra.mxu0 %v134
    %170 = vmatprep.subr.bf16.mxu0 %v133
    %171 = vmatpush1.bf16.msra.mxu0 %v132
    %172 = vmatprep.subr.bf16.mxu0 %v131
    %173 = vmatpush1.bf16.msra.mxu0 %v130
    %174 = vmatprep.subr.bf16.mxu0 %v129
    %175 = vmatpush1.bf16.msra.mxu0 %v128
    %176 = vmatprep.subr.bf16.mxu0 0
    %177 = vmatpush2.bf16.msra.mxu0 0
    %178 = vmatprep.subr.bf16.mxu0 0
    %179 = vmatpush2.bf16.msra.mxu0 0
    %180 = vmatprep.subr.bf16.mxu0 0
    %181 = vmatpush2.bf16.msra.mxu0 0
    %182 = vmatprep.subr.bf16.mxu0 0
    %183 = vmatpush2.bf16.msra.mxu0 0
    %184 = vmatprep.subr.bf16.mxu0 0
    %185 = vmatpush2.bf16.msra.mxu0 0
    %186 = vmatprep.subr.bf16.mxu0 0
    %187 = vmatpush2.bf16.msra.mxu0 0
    %188 = vmatprep.subr.bf16.mxu0 0
    %189 = vmatpush2.bf16.msra.mxu0 0
    %190 = vmatprep.subr.bf16.mxu0 0
    %191 = vmatpush2.bf16.msra.mxu0 0
    %192 = vmatprep.mubr.bf16.mxu0 0
    %193 = vmatmul.mubr.bf16.gmra.mxu0 %v63
    %v194 = vpop.f32.mrf.mxu0
    %v195 = vadd.f32 0.0, %v194
    %v196 = vpop.f32.mrf.mxu0
    %v197 = vadd.f32 0.0, %v196
    %v198 = vpop.f32.mrf.mxu0
    %v199 = vadd.f32 0.0, %v198
    %v200 = vpop.f32.mrf.mxu0
    %v201 = vadd.f32 0.0, %v200
    %202 = vdwg.mxu0
    %203 = vst [vmem:[#allocation8] sm:$0xff] %v195
    %204 = vst [vmem:[#allocation8 + $0x8] sm:$0xff] %v197
    %205 = vst [vmem:[#allocation8 + $0x10] sm:$0xff] %v199
    %206 = vst [vmem:[#allocation8 + $0x18] sm:$0xff] %v201
    // Predicated region
    $region22: #{tpu_custom_call.1} parent=1 // pred_check
      _
    $region23: #{tpu_custom_call.1} parent=1 // pred_check_branch
      %208 = sbr.rel (0) target = $region25
    $region24: #{tpu_custom_call.1} parent=1 // pred_region
      %s210 = ssub.s32 512, 512
      %211 = vsyncadd [#allocation5], %s210
      %s212 = sshll.u32 [#allocation8], 4
      %s213 = int_to_ptr.vmem [resolvable:$true] %s212
      %218 = dma.vmem_to_hbm [thread:$0]  %s213, 512, %s3, [#allocation5], 256, 256, 16
    $region25: #{tpu_custom_call.1} parent=1 // pred_fallthru
      _
    // Predicated region
    $region26: #{tpu_custom_call.1} parent=1 // pred_check
      _
    $region27: #{tpu_custom_call.1} parent=1 // pred_check_branch
      %220 = sbr.rel (0) target = $region29
    $region28: #{tpu_custom_call.1} parent=1 // pred_region
      %221 = dma.done [#allocation5], 512
    $region29: #{tpu_custom_call.1} parent=1 // pred_fallthru
      _
    %222 = vsyncpa [#allocation4], 1
    %223 = vsyncpa [#allocation7], 1
    %224 = vsyncpa [#allocation5], 1

</llo_original>
